<compile_context>
chip_gen: v7x
topology: tpu7x:2x2x1
jax: 0.10.0
libtpu: 0.0.40
codegen_flags: <defaults>
</compile_context>

<pallas_src>
import jax
import jax.numpy as jnp
import numpy as np
from jax import lax
from jax.experimental import pallas as pl
from jax.experimental.pallas import tpu as pltpu


def _pick_tile_rows(H2, W):
    """Output-row tile: lane-dense (>=128 lanes), ~<=1024-lane blocks, and
    >=2 row tiles when the image allows (so the pipeline has steps)."""
    min_rows = -(-128 // W)                        # >= 128 output lanes
    budget_rows = max(min_rows, 1024 // max(W, 1))  # keep blocks modest
    th = max(min_rows, min(budget_rows, -(-H2 // 2)))
    return max(1, min(th, max(H2, 1)))


def double_conv(x_nchw, params, *, tile_rows=None):
    """Pallas DoubleConv forward.  x_nchw: (N, Cin, H, W).  -> (N, Cout, H-4, W-4) f32."""
    w1, b1, w2, b2 = params                 # (Cout,Cin,3,3),(Cout,),(Cout,Cout,3,3),(Cout,)
    N, Cin, H, W = x_nchw.shape
    Cout = w1.shape[0]
    assert w1.shape == (Cout, Cin, 3, 3) and w2.shape == (Cout, Cout, 3, 3)
    assert H >= 5 and W >= 5, "double 3x3 VALID conv needs H, W >= 5"
    H2, W2 = H - 4, W - 4

    TH = tile_rows if tile_rows is not None else _pick_tile_rows(H2, W)
    R = -(-H2 // TH)                         # number of output-row tiles
    H2p = R * TH                             # padded output rows

    NY = TH * W                              # conv2 flat cols per tile (lane-dense out)
    NH = (TH + 2) * W                        # conv1 flat cols per tile
    LH = NH + 2                              # h scratch cols   (max shift 2W+2 over NY)
    LX = (TH + 4) * W + 2                    # x cols per tile  (max shift 2W+2 over NH)

    # ------------- wrapper-side layout prep (cheap, no 9x patch matrix in HBM) --
    x_flat = x_nchw.reshape(N, Cin, H * W).astype(jnp.bfloat16)   # bf16 MXU inputs
    pad = (H2p + 4) * W + 2 - H * W                               # last-tile halo + 2 cols
    x_flat = jnp.pad(x_flat, ((0, 0), (0, 0), (0, pad)))
    # Overlapping row-halo tiles (TH+4 input rows + 2 extra columns per tile).
    xt = jnp.stack(
        [lax.slice_in_dim(x_flat, r * TH * W, r * TH * W + LX, axis=2)
         for r in range(R)], axis=1)                              # (N, R, Cin, LX)

    # Tap-stacked weights: (Cout, 9*C) with K index = (dy*3 + dx)*C + c.
    w1s = jnp.transpose(w1, (0, 2, 3, 1)).reshape(Cout, 9 * Cin).astype(jnp.bfloat16)
    w2s = jnp.transpose(w2, (0, 2, 3, 1)).reshape(Cout, 9 * Cout).astype(jnp.bfloat16)
    b1c = b1.reshape(Cout, 1).astype(jnp.float32)
    b2c = b2.reshape(Cout, 1).astype(jnp.float32)

    shifts = tuple(dy * W + dx for dy in range(3) for dx in range(3))

    def kernel(x_ref, w1_ref, b1_ref, w2_ref, b2_ref, o_ref, h_scr, p1_scr, p2_scr):
        x2 = x_ref[0, 0, :, :]                                    # (Cin, LX) bf16

        # -- stage 1: im2col via 9 shifted VMEM copies, ONE GEMM with K = 9*Cin.
        #    (When W % 128 == 0 the dy*W part of each shift is lane-aligned and
        #     only the dx=1,2 copies need an XLU roll; at toy W this is moot.)
        for k, s in enumerate(shifts):
            p1_scr[k * Cin:(k + 1) * Cin, :] = x2[:, s:s + NH]
        h = jnp.dot(w1_ref[...], p1_scr[...],
                    preferred_element_type=jnp.float32)           # (Cout, NH) f32
        # fused bias + ReLU + bf16 cast in a single epilogue pass; stays in VMEM
        h_scr[:, :NH] = jnp.maximum(h + b1_ref[...], 0.0).astype(h_scr.dtype)
        h_scr[:, NH:LH] = jnp.zeros((Cout, LH - NH), h_scr.dtype)  # defined tail

        # -- stage 2: same trick on h; GEMM result goes straight to the output.
        for k, s in enumerate(shifts):
            p2_scr[k * Cout:(k + 1) * Cout, :] = h_scr[:, s:s + NY]
        y = jnp.dot(w2_ref[...], p2_scr[...],
                    preferred_element_type=jnp.float32)           # (Cout, NY) f32
        # one lane-dense, unmasked store of the whole output block
        o_ref[0, 0, :, :] = jnp.maximum(y + b2_ref[...], 0.0)

    out_t = pl.pallas_call(
        kernel,
        out_shape=jax.ShapeDtypeStruct((N, R, Cout, NY), jnp.float32),
        grid=(N, R),
        in_specs=[
            pl.BlockSpec((1, 1, Cin, LX), lambda n, r: (n, r, 0, 0)),
            pl.BlockSpec((Cout, 9 * Cin), lambda n, r: (0, 0)),
            pl.BlockSpec((Cout, 1), lambda n, r: (0, 0)),
            pl.BlockSpec((Cout, 9 * Cout), lambda n, r: (0, 0)),
            pl.BlockSpec((Cout, 1), lambda n, r: (0, 0)),
        ],
        out_specs=pl.BlockSpec((1, 1, Cout, NY), lambda n, r: (n, r, 0, 0)),
        scratch_shapes=[
            pltpu.VMEM((Cout, LH), jnp.bfloat16),      # intermediate activation h
            pltpu.VMEM((9 * Cin, NH), jnp.bfloat16),   # stage-1 stacked patches
            pltpu.VMEM((9 * Cout, NY), jnp.bfloat16),  # stage-2 stacked patches
        ],
        compiler_params=pltpu.CompilerParams(
            dimension_semantics=("parallel", "parallel"),
            vmem_limit_bytes=32 * 1024 * 1024),
    )(xt, w1s, b1c, w2s, b2c)

    # ---- cheap wrapper-side crop/reshape of the lane-dense kernel output -------
    out = out_t.reshape(N, R, Cout, TH, W)
    out = jnp.transpose(out, (0, 2, 1, 3, 4)).reshape(N, Cout, H2p, W)
    return out[:, :, :H2, :W2]


def _reference_double_conv(x_nchw, params):
    """Pure-JAX reference mirroring the kernel's bf16-in / f32-accumulate precision."""
    w1, b1, w2, b2 = params
    dn = ("NCHW", "OIHW", "NCHW")
    h = lax.conv_general_dilated(
        x_nchw.astype(jnp.bfloat16), w1.astype(jnp.bfloat16), (1, 1), "VALID",
        dimension_numbers=dn, preferred_element_type=jnp.float32)
    h = jnp.maximum(h + b1[None, :, None, None], 0.0).astype(jnp.bfloat16)
    y = lax.conv_general_dilated(
        h, w2.astype(jnp.bfloat16), (1, 1), "VALID",
        dimension_numbers=dn, preferred_element_type=jnp.float32)
    return jnp.maximum(y + b2[None, :, None, None], 0.0)


def init_params(key, in_channel, out_channel):
    """Deterministic synthetic params; shapes/layout match nn.Conv2d(k=3)."""
    k1, k2, k3, k4 = jax.random.split(key, 4)
    s1 = 1.0 / np.sqrt(in_channel * 9)
    s2 = 1.0 / np.sqrt(out_channel * 9)
    w1 = jax.random.uniform(k1, (out_channel, in_channel, 3, 3), jnp.float32, -s1, s1)
    b1 = jax.random.uniform(k2, (out_channel,), jnp.float32, -s1, s1)
    w2 = jax.random.uniform(k3, (out_channel, out_channel, 3, 3), jnp.float32, -s2, s2)
    b2 = jax.random.uniform(k4, (out_channel,), jnp.float32, -s2, s2)
    return (w1, b1, w2, b2)


if __name__ == "__main__":
    key = jax.random.PRNGKey(0)
    kx, kp = jax.random.split(key)

    N, Cin, Cout, H, W = 2, 4, 8, 16, 16
    x = jax.random.normal(kx, (N, Cin, H, W), jnp.float32)
    params = init_params(kp, Cin, Cout)

    y = jax.block_until_ready(double_conv(x, params))
    assert y.shape == (N, Cout, H - 4, W - 4), y.shape

    y_ref = jax.block_until_ready(_reference_double_conv(x, params))
    np.testing.assert_allclose(np.asarray(y), np.asarray(y_ref), rtol=1e-2, atol=1e-2)

    print("KERNEL_OK")
</pallas_src>

<mosaic_0001>
module attributes {stable_mosaic.version = 11 : i64} {
  func.func @kernel(%arg0: i32, %arg1: i32, %arg2: memref<1x1x4x194xbf16, #tpu.memory_space<vmem>>, %arg3: memref<8x36xbf16, #tpu.memory_space<vmem>>, %arg4: memref<8x1xf32, #tpu.memory_space<vmem>>, %arg5: memref<8x72xbf16, #tpu.memory_space<vmem>>, %arg6: memref<8x1xf32, #tpu.memory_space<vmem>>, %arg7: memref<1x1x8x128xf32, #tpu.memory_space<vmem>>, %arg8: memref<8x162xbf16, #tpu.memory_space<vmem>>, %arg9: memref<36x160xbf16, #tpu.memory_space<vmem>>, %arg10: memref<72x128xbf16, #tpu.memory_space<vmem>>) attributes {dimension_semantics = [#tpu.dimension_semantics<parallel>, #tpu.dimension_semantics<parallel>], iteration_bounds = array<i64: 2, 2>, scalar_prefetch = 0 : i64, scratch_operands = 3 : i64, tpu.core_type = #tpu.core_type<tc>, window_params = [{transform_indices = @transform_0, window_bounds = array<i64: 1, 1, 4, 194>}, {pipeline_mode = #tpu.pipeline_mode<synchronous>, transform_indices = @transform_1, window_bounds = array<i64: 8, 36>}, {pipeline_mode = #tpu.pipeline_mode<synchronous>, transform_indices = @transform_2, window_bounds = array<i64: 8, 1>}, {pipeline_mode = #tpu.pipeline_mode<synchronous>, transform_indices = @transform_3, window_bounds = array<i64: 8, 72>}, {pipeline_mode = #tpu.pipeline_mode<synchronous>, transform_indices = @transform_4, window_bounds = array<i64: 8, 1>}, {transform_indices = @transform_5, window_bounds = array<i64: 1, 1, 8, 128>}]} {
    %c0 = arith.constant 0 : index
    %c0_0 = arith.constant 0 : index
    %c0_1 = arith.constant 0 : index
    %c0_2 = arith.constant 0 : index
    %0 = vector.load %arg2[%c0, %c0_0, %c0_1, %c0_2] : memref<1x1x4x194xbf16, #tpu.memory_space<vmem>>, vector<1x1x4x194xbf16>
    %1 = vector.shape_cast %0 : vector<1x1x4x194xbf16> to vector<4x194xbf16>
    %2 = vector.extract_strided_slice %1 {offsets = [0, 0], sizes = [4, 160], strides = [1, 1]} : vector<4x194xbf16> to vector<4x160xbf16>
    %c0_3 = arith.constant 0 : index
    %c0_4 = arith.constant 0 : index
    %3 = vector.load %arg9[%c0_3, %c0_4] : memref<36x160xbf16, #tpu.memory_space<vmem>>, vector<4x160xbf16>
    tpu.vector_store %arg9[%c0_3, %c0_4], %2 {strides = array<i32>} : memref<36x160xbf16, #tpu.memory_space<vmem>>, vector<4x160xbf16>,
    %4 = vector.extract_strided_slice %1 {offsets = [0, 1], sizes = [4, 160], strides = [1, 1]} : vector<4x194xbf16> to vector<4x160xbf16>
    %c4 = arith.constant 4 : index
    %c0_5 = arith.constant 0 : index
    %5 = vector.load %arg9[%c4, %c0_5] : memref<36x160xbf16, #tpu.memory_space<vmem>>, vector<4x160xbf16>
    tpu.vector_store %arg9[%c4, %c0_5], %4 {strides = array<i32>} : memref<36x160xbf16, #tpu.memory_space<vmem>>, vector<4x160xbf16>,
    %6 = vector.extract_strided_slice %1 {offsets = [0, 2], sizes = [4, 160], strides = [1, 1]} : vector<4x194xbf16> to vector<4x160xbf16>
    %c8 = arith.constant 8 : index
    %c0_6 = arith.constant 0 : index
    %7 = vector.load %arg9[%c8, %c0_6] : memref<36x160xbf16, #tpu.memory_space<vmem>>, vector<4x160xbf16>
    tpu.vector_store %arg9[%c8, %c0_6], %6 {strides = array<i32>} : memref<36x160xbf16, #tpu.memory_space<vmem>>, vector<4x160xbf16>,
    %8 = vector.extract_strided_slice %1 {offsets = [0, 16], sizes = [4, 160], strides = [1, 1]} : vector<4x194xbf16> to vector<4x160xbf16>
    %c12 = arith.constant 12 : index
    %c0_7 = arith.constant 0 : index
    %9 = vector.load %arg9[%c12, %c0_7] : memref<36x160xbf16, #tpu.memory_space<vmem>>, vector<4x160xbf16>
    tpu.vector_store %arg9[%c12, %c0_7], %8 {strides = array<i32>} : memref<36x160xbf16, #tpu.memory_space<vmem>>, vector<4x160xbf16>,
    %10 = vector.extract_strided_slice %1 {offsets = [0, 17], sizes = [4, 160], strides = [1, 1]} : vector<4x194xbf16> to vector<4x160xbf16>
    %c16 = arith.constant 16 : index
    %c0_8 = arith.constant 0 : index
    %11 = vector.load %arg9[%c16, %c0_8] : memref<36x160xbf16, #tpu.memory_space<vmem>>, vector<4x160xbf16>
    tpu.vector_store %arg9[%c16, %c0_8], %10 {strides = array<i32>} : memref<36x160xbf16, #tpu.memory_space<vmem>>, vector<4x160xbf16>,
    %12 = vector.extract_strided_slice %1 {offsets = [0, 18], sizes = [4, 160], strides = [1, 1]} : vector<4x194xbf16> to vector<4x160xbf16>
    %c20 = arith.constant 20 : index
    %c0_9 = arith.constant 0 : index
    %13 = vector.load %arg9[%c20, %c0_9] : memref<36x160xbf16, #tpu.memory_space<vmem>>, vector<4x160xbf16>
    tpu.vector_store %arg9[%c20, %c0_9], %12 {strides = array<i32>} : memref<36x160xbf16, #tpu.memory_space<vmem>>, vector<4x160xbf16>,
    %14 = vector.extract_strided_slice %1 {offsets = [0, 32], sizes = [4, 160], strides = [1, 1]} : vector<4x194xbf16> to vector<4x160xbf16>
    %c24 = arith.constant 24 : index
    %c0_10 = arith.constant 0 : index
    %15 = vector.load %arg9[%c24, %c0_10] : memref<36x160xbf16, #tpu.memory_space<vmem>>, vector<4x160xbf16>
    tpu.vector_store %arg9[%c24, %c0_10], %14 {strides = array<i32>} : memref<36x160xbf16, #tpu.memory_space<vmem>>, vector<4x160xbf16>,
    %16 = vector.extract_strided_slice %1 {offsets = [0, 33], sizes = [4, 160], strides = [1, 1]} : vector<4x194xbf16> to vector<4x160xbf16>
    %c28 = arith.constant 28 : index
    %c0_11 = arith.constant 0 : index
    %17 = vector.load %arg9[%c28, %c0_11] : memref<36x160xbf16, #tpu.memory_space<vmem>>, vector<4x160xbf16>
    tpu.vector_store %arg9[%c28, %c0_11], %16 {strides = array<i32>} : memref<36x160xbf16, #tpu.memory_space<vmem>>, vector<4x160xbf16>,
    %18 = vector.extract_strided_slice %1 {offsets = [0, 34], sizes = [4, 160], strides = [1, 1]} : vector<4x194xbf16> to vector<4x160xbf16>
    %c32 = arith.constant 32 : index
    %c0_12 = arith.constant 0 : index
    %19 = vector.load %arg9[%c32, %c0_12] : memref<36x160xbf16, #tpu.memory_space<vmem>>, vector<4x160xbf16>
    tpu.vector_store %arg9[%c32, %c0_12], %18 {strides = array<i32>} : memref<36x160xbf16, #tpu.memory_space<vmem>>, vector<4x160xbf16>,
    %c0_13 = arith.constant 0 : index
    %c0_14 = arith.constant 0 : index
    %20 = vector.load %arg3[%c0_13, %c0_14] : memref<8x36xbf16, #tpu.memory_space<vmem>>, vector<8x36xbf16>
    %c0_15 = arith.constant 0 : index
    %c0_16 = arith.constant 0 : index
    %21 = vector.load %arg9[%c0_15, %c0_16] : memref<36x160xbf16, #tpu.memory_space<vmem>>, vector<36x160xbf16>
    %cst = arith.constant dense<0.000000e+00> : vector<8x160xf32>
    %22 = tpu.matmul %20, %21, %cst {dimension_numbers = #tpu.dot_dimension_numbers<[1], [0], [0], [1], [0, 0, 1, 1], [], []>} : vector<8x36xbf16>, vector<36x160xbf16>, vector<8x160xf32> -> vector<8x160xf32>
    %c0_17 = arith.constant 0 : index
    %c0_18 = arith.constant 0 : index
    %23 = vector.load %arg4[%c0_17, %c0_18] : memref<8x1xf32, #tpu.memory_space<vmem>>, vector<8x1xf32>
    %24 = vector.broadcast %23 : vector<8x1xf32> to vector<8x160xf32>
    %25 = arith.addf %22, %24 : vector<8x160xf32>
    %cst_19 = arith.constant 0.000000e+00 : f32
    %26 = vector.broadcast %cst_19 : f32 to vector<8x160xf32>
    %27 = arith.maximumf %25, %26 : vector<8x160xf32>
    %28 = arith.truncf %27 : vector<8x160xf32> to vector<8x160xbf16>
    %c0_20 = arith.constant 0 : index
    %c0_21 = arith.constant 0 : index
    %29 = vector.load %arg8[%c0_20, %c0_21] : memref<8x162xbf16, #tpu.memory_space<vmem>>, vector<8x160xbf16>
    tpu.vector_store %arg8[%c0_20, %c0_21], %28 {strides = array<i32>} : memref<8x162xbf16, #tpu.memory_space<vmem>>, vector<8x160xbf16>,
    %cst_22 = arith.constant 0.000000e+00 : bf16
    %30 = vector.broadcast %cst_22 : bf16 to vector<8x2xbf16>
    %c0_23 = arith.constant 0 : index
    %c160 = arith.constant 160 : index
    %31 = vector.load %arg8[%c0_23, %c160] : memref<8x162xbf16, #tpu.memory_space<vmem>>, vector<8x2xbf16>
    tpu.vector_store %arg8[%c0_23, %c160], %30 {strides = array<i32>} : memref<8x162xbf16, #tpu.memory_space<vmem>>, vector<8x2xbf16>,
    %c0_24 = arith.constant 0 : index
    %c0_25 = arith.constant 0 : index
    %32 = vector.load %arg8[%c0_24, %c0_25] : memref<8x162xbf16, #tpu.memory_space<vmem>>, vector<8x128xbf16>
    %c0_26 = arith.constant 0 : index
    %c0_27 = arith.constant 0 : index
    %33 = vector.load %arg10[%c0_26, %c0_27] : memref<72x128xbf16, #tpu.memory_space<vmem>>, vector<8x128xbf16>
    tpu.vector_store %arg10[%c0_26, %c0_27], %32 {strides = array<i32>} : memref<72x128xbf16, #tpu.memory_space<vmem>>, vector<8x128xbf16>,
    %c0_28 = arith.constant 0 : index
    %c1 = arith.constant 1 : index
    %34 = vector.load %arg8[%c0_28, %c1] : memref<8x162xbf16, #tpu.memory_space<vmem>>, vector<8x128xbf16>
    %c8_29 = arith.constant 8 : index
    %c0_30 = arith.constant 0 : index
    %35 = vector.load %arg10[%c8_29, %c0_30] : memref<72x128xbf16, #tpu.memory_space<vmem>>, vector<8x128xbf16>
    tpu.vector_store %arg10[%c8_29, %c0_30], %34 {strides = array<i32>} : memref<72x128xbf16, #tpu.memory_space<vmem>>, vector<8x128xbf16>,
    %c0_31 = arith.constant 0 : index
    %c2 = arith.constant 2 : index
    %36 = vector.load %arg8[%c0_31, %c2] : memref<8x162xbf16, #tpu.memory_space<vmem>>, vector<8x128xbf16>
    %c16_32 = arith.constant 16 : index
    %c0_33 = arith.constant 0 : index
    %37 = vector.load %arg10[%c16_32, %c0_33] : memref<72x128xbf16, #tpu.memory_space<vmem>>, vector<8x128xbf16>
    tpu.vector_store %arg10[%c16_32, %c0_33], %36 {strides = array<i32>} : memref<72x128xbf16, #tpu.memory_space<vmem>>, vector<8x128xbf16>,
    %c0_34 = arith.constant 0 : index
    %c16_35 = arith.constant 16 : index
    %38 = vector.load %arg8[%c0_34, %c16_35] : memref<8x162xbf16, #tpu.memory_space<vmem>>, vector<8x128xbf16>
    %c24_36 = arith.constant 24 : index
    %c0_37 = arith.constant 0 : index
    %39 = vector.load %arg10[%c24_36, %c0_37] : memref<72x128xbf16, #tpu.memory_space<vmem>>, vector<8x128xbf16>
    tpu.vector_store %arg10[%c24_36, %c0_37], %38 {strides = array<i32>} : memref<72x128xbf16, #tpu.memory_space<vmem>>, vector<8x128xbf16>,
    %c0_38 = arith.constant 0 : index
    %c17 = arith.constant 17 : index
    %40 = vector.load %arg8[%c0_38, %c17] : memref<8x162xbf16, #tpu.memory_space<vmem>>, vector<8x128xbf16>
    %c32_39 = arith.constant 32 : index
    %c0_40 = arith.constant 0 : index
    %41 = vector.load %arg10[%c32_39, %c0_40] : memref<72x128xbf16, #tpu.memory_space<vmem>>, vector<8x128xbf16>
    tpu.vector_store %arg10[%c32_39, %c0_40], %40 {strides = array<i32>} : memref<72x128xbf16, #tpu.memory_space<vmem>>, vector<8x128xbf16>,
    %c0_41 = arith.constant 0 : index
    %c18 = arith.constant 18 : index
    %42 = vector.load %arg8[%c0_41, %c18] : memref<8x162xbf16, #tpu.memory_space<vmem>>, vector<8x128xbf16>
    %c40 = arith.constant 40 : index
    %c0_42 = arith.constant 0 : index
    %43 = vector.load %arg10[%c40, %c0_42] : memref<72x128xbf16, #tpu.memory_space<vmem>>, vector<8x128xbf16>
    tpu.vector_store %arg10[%c40, %c0_42], %42 {strides = array<i32>} : memref<72x128xbf16, #tpu.memory_space<vmem>>, vector<8x128xbf16>,
    %c0_43 = arith.constant 0 : index
    %c32_44 = arith.constant 32 : index
    %44 = vector.load %arg8[%c0_43, %c32_44] : memref<8x162xbf16, #tpu.memory_space<vmem>>, vector<8x128xbf16>
    %c48 = arith.constant 48 : index
    %c0_45 = arith.constant 0 : index
    %45 = vector.load %arg10[%c48, %c0_45] : memref<72x128xbf16, #tpu.memory_space<vmem>>, vector<8x128xbf16>
    tpu.vector_store %arg10[%c48, %c0_45], %44 {strides = array<i32>} : memref<72x128xbf16, #tpu.memory_space<vmem>>, vector<8x128xbf16>,
    %c0_46 = arith.constant 0 : index
    %c33 = arith.constant 33 : index
    %46 = vector.load %arg8[%c0_46, %c33] : memref<8x162xbf16, #tpu.memory_space<vmem>>, vector<8x128xbf16>
    %c56 = arith.constant 56 : index
    %c0_47 = arith.constant 0 : index
    %47 = vector.load %arg10[%c56, %c0_47] : memref<72x128xbf16, #tpu.memory_space<vmem>>, vector<8x128xbf16>
    tpu.vector_store %arg10[%c56, %c0_47], %46 {strides = array<i32>} : memref<72x128xbf16, #tpu.memory_space<vmem>>, vector<8x128xbf16>,
    %c0_48 = arith.constant 0 : index
    %c34 = arith.constant 34 : index
    %48 = vector.load %arg8[%c0_48, %c34] : memref<8x162xbf16, #tpu.memory_space<vmem>>, vector<8x128xbf16>
    %c64 = arith.constant 64 : index
    %c0_49 = arith.constant 0 : index
    %49 = vector.load %arg10[%c64, %c0_49] : memref<72x128xbf16, #tpu.memory_space<vmem>>, vector<8x128xbf16>
    tpu.vector_store %arg10[%c64, %c0_49], %48 {strides = array<i32>} : memref<72x128xbf16, #tpu.memory_space<vmem>>, vector<8x128xbf16>,
    %c0_50 = arith.constant 0 : index
    %c0_51 = arith.constant 0 : index
    %50 = vector.load %arg5[%c0_50, %c0_51] : memref<8x72xbf16, #tpu.memory_space<vmem>>, vector<8x72xbf16>
    %c0_52 = arith.constant 0 : index
    %c0_53 = arith.constant 0 : index
    %51 = vector.load %arg10[%c0_52, %c0_53] : memref<72x128xbf16, #tpu.memory_space<vmem>>, vector<72x128xbf16>
    %cst_54 = arith.constant dense<0.000000e+00> : vector<8x128xf32>
    %52 = tpu.matmul %50, %51, %cst_54 {dimension_numbers = #tpu.dot_dimension_numbers<[1], [0], [0], [1], [0, 0, 1, 1], [], []>} : vector<8x72xbf16>, vector<72x128xbf16>, vector<8x128xf32> -> vector<8x128xf32>
    %c0_55 = arith.constant 0 : index
    %c0_56 = arith.constant 0 : index
    %53 = vector.load %arg6[%c0_55, %c0_56] : memref<8x1xf32, #tpu.memory_space<vmem>>, vector<8x1xf32>
    %54 = vector.broadcast %53 : vector<8x1xf32> to vector<8x128xf32>
    %55 = arith.addf %52, %54 : vector<8x128xf32>
    %cst_57 = arith.constant 0.000000e+00 : f32
    %56 = vector.broadcast %cst_57 : f32 to vector<8x128xf32>
    %57 = arith.maximumf %55, %56 : vector<8x128xf32>
    %c0_58 = arith.constant 0 : index
    %c0_59 = arith.constant 0 : index
    %c0_60 = arith.constant 0 : index
    %c0_61 = arith.constant 0 : index
    %58 = vector.load %arg7[%c0_58, %c0_59, %c0_60, %c0_61] : memref<1x1x8x128xf32, #tpu.memory_space<vmem>>, vector<1x1x8x128xf32>
    %59 = vector.shape_cast %58 : vector<1x1x8x128xf32> to vector<8x128xf32>
    %60 = vector.shape_cast %57 : vector<8x128xf32> to vector<1x1x8x128xf32>
    tpu.vector_store %arg7[%c0_58, %c0_59, %c0_60, %c0_61], %60 {strides = array<i32>} : memref<1x1x8x128xf32, #tpu.memory_space<vmem>>, vector<1x1x8x128xf32>,
    return
  }
  func.func @transform_0(%arg0: i32, %arg1: i32) -> (i32, i32, i32, i32) {
    %c0_i32 = arith.constant 0 : i32
    %c0_i32_0 = arith.constant 0 : i32
    %c0_i32_1 = arith.constant 0 : i32
    return %arg0, %arg1, %c0_i32, %c0_i32_0 : i32, i32, i32, i32
  }
  func.func @transform_1(%arg0: i32, %arg1: i32) -> (i32, i32) {
    %c0_i32 = arith.constant 0 : i32
    %c0_i32_0 = arith.constant 0 : i32
    %c0_i32_1 = arith.constant 0 : i32
    return %c0_i32, %c0_i32_0 : i32, i32
  }
  func.func @transform_2(%arg0: i32, %arg1: i32) -> (i32, i32) {
    %c0_i32 = arith.constant 0 : i32
    %c0_i32_0 = arith.constant 0 : i32
    %c0_i32_1 = arith.constant 0 : i32
    return %c0_i32, %c0_i32_0 : i32, i32
  }
  func.func @transform_3(%arg0: i32, %arg1: i32) -> (i32, i32) {
    %c0_i32 = arith.constant 0 : i32
    %c0_i32_0 = arith.constant 0 : i32
    %c0_i32_1 = arith.constant 0 : i32
    return %c0_i32, %c0_i32_0 : i32, i32
  }
  func.func @transform_4(%arg0: i32, %arg1: i32) -> (i32, i32) {
    %c0_i32 = arith.constant 0 : i32
    %c0_i32_0 = arith.constant 0 : i32
    %c0_i32_1 = arith.constant 0 : i32
    return %c0_i32, %c0_i32_0 : i32, i32
  }
  func.func @transform_5(%arg0: i32, %arg1: i32) -> (i32, i32, i32, i32) {
    %c0_i32 = arith.constant 0 : i32
    %c0_i32_0 = arith.constant 0 : i32
    %c0_i32_1 = arith.constant 0 : i32
    return %arg0, %arg1, %c0_i32, %c0_i32_0 : i32, i32, i32, i32
  }
}

</mosaic_0001>

<llo_original>
// kernel: tpu_custom_call.1
$region0: #{tpu_custom_call.1}
  #allocation0 [shape = 'u32[]', space=smem, size = 0x4, offset = 0x4, fixed_abs, tag = 'smem constant byte address 0x4 - core index']
  #allocation1 [shape = 'u32[144,128]{1,0:T(1,128)}', space=vmem, size = 0x12000, scoped, tag = 'internal scratch']
  #allocation2 [shape = 'bf16[8,162]{1,0:T(8,128)(2,1)}', space=vmem, size = 0x1000, scoped, tag = 'scratch operand']
  #allocation3 [shape = 'bf16[36,160]{1,0:T(8,128)(2,1)}', space=vmem, size = 0x5000, scoped, tag = 'scratch operand']
  #allocation4 [shape = 'bf16[72,128]{1,0:T(8,128)(2,1)}', space=vmem, size = 0x4800, scoped, tag = 'scratch operand']
  %s0 = inlined_call_operand.vmem [shape: bf16[2,2,4,194], index: 0, kind: input, shape index: {}]
  %s1 = inlined_call_operand.vmem [shape: bf16[8,36], index: 1, kind: input, shape index: {}]
  %s2 = inlined_call_operand.vmem [shape: f32[8,1], index: 2, kind: input, shape index: {}]
  %s3 = inlined_call_operand.vmem [shape: bf16[8,72], index: 3, kind: input, shape index: {}]
  %s4 = inlined_call_operand.vmem [shape: f32[8,1], index: 4, kind: input, shape index: {}]
  %s5 = inlined_call_operand.hbm [shape: f32[2,2,8,128], index: 5, kind: output, shape index: {}]
  %s6 = sld [smem:[#allocation0]]
  $region53: #{tpu_custom_call.1} parent=0
    _
  %s8 = ssub.s32 1, %s6
  %s9 = scalar_select 0, %s8, %s6
  $region1: #{tpu_custom_call.1} parent=0
    #allocation5 [shape = 'u8[8192]{0}', space=vmem, size = 0x2000, scoped, tag = 'output window, operand 0']
    #allocation6 [shape = 's32[2]{0}', space=sflag, size = 0x8, scoped, tag = 'scoped memory for tpu_custom_call.1']
    %10 = vsyncpa [#allocation6], 0
    %s11 = scalar_lea.sflag [#allocation6], 1
    %12 = vsyncpa %s11, 0
    loop: start=0, step=1, limit=6
    $region2: #{tpu_custom_call.1} parent=1 // loop_pre_header
      _
    $region3: #{tpu_custom_call.1} parent=1 // loop_header
      %s14 = sphi 0, %s18
      %p15 = scmp.ge.s32.totalorder %s14, 6
      %s21 = sphi 0, %s33
      %s22 = sphi 0, %s29
      %s23 = sphi 0, %s21
      %s24 = sphi 0, %s22
      %s25 = sphi 0, %s23
      %s26 = sphi 0, %s24
      %s38 = sphi 0, %s40
      %s41 = sphi 0, %s38
      %s42 = sphi 0, %s41
      %s58 = sphi 0, %s42
      %s62 = sphi 0, %s62
      %s64 = sphi 0, %s62
      %s65 = sphi 0, %s64
      %s79 = sphi 0, %s65
      %s83 = sphi 0, %s83
      %s85 = sphi 0, %s83
      %s86 = sphi 0, %s85
      %s100 = sphi 0, %s86
      %s104 = sphi 0, %s104
      %s106 = sphi 0, %s104
      %s107 = sphi 0, %s106
      %s121 = sphi 0, %s107
      %s125 = sphi 0, %s125
      %s127 = sphi 0, %s125
      %s128 = sphi 0, %s127
      %s142 = sphi 0, %s128
      %s150 = sphi 0, %s152
      %s153 = sphi 0, %s150
      %s154 = sphi 0, %s153
      %s170 = sphi 0, %s154
    $region4: #{tpu_custom_call.1} parent=1 // loop_header_branch
      %17 = sbr.rel (%p15) target = $region8
    $region5: #{tpu_custom_call.1} parent=1 // loop_body
      %s19 = ssub.s32 %s14, 1
      %s20 = ssub.s32 %s14, 2
      %s27 = sadd.s32 1, %s22
      %p28 = scmp.ge.s32.totalorder %s27, 2
      %s29 = scalar_select %p28, 0, %s27
      %s30 = sadd.s32 1, %s21
      %s31 = scalar_select %p28, %s30, %s21
      %p32 = scmp.ge.s32.totalorder %s31, 2
      %s33 = scalar_select %p32, 0, %s31
      %s34 = ssub.s32 %s21, %s33
      %s35 = ssub.s32 %s22, %s29
      %s36 = sor.u32 %s34, %s35
      %p37 = scmp.eq.s32.totalorder %s36, 0
      %s39 = sadd.s32 %s38, 1
      %s40 = scalar_select %p37, %s38, %s39
      %p43 = pneg %p37
      %p44 = scmp.eq.s32.totalorder %s14, 3
      %p45 = por %p43, %p44
      %p46 = scmp.ne.s32.totalorder %s38, %s41
      %p47 = scmp.eq.s32.totalorder %s14, 0
      %p48 = por %p46, %p47
      %p49 = scmp.ne.s32.totalorder %s38, %s41
      %p50 = scmp.eq.s32.totalorder %s19, 3
      %p51 = por %p49, %p50
      %p52 = scmp.ne.s32.totalorder %s41, %s42
      %p53 = scmp.eq.s32.totalorder %s19, 0
      %p54 = por %p52, %p53
      %p55 = scmp.ne.s32.totalorder %s41, %s42
      %p56 = scmp.eq.s32.totalorder %s20, 3
      %p57 = por %p55, %p56
      %p59 = scmp.ne.s32.totalorder %s42, %s58
      %p60 = scmp.eq.s32.totalorder %s20, 0
      %p61 = por %p59, %p60
      %s63 = sadd.s32 %s62, 1
      %p66 = scmp.eq.s32.totalorder %s14, 3
      %p67 = scmp.ne.s32.totalorder %s62, %s64
      %p68 = scmp.eq.s32.totalorder %s14, 0
      %p69 = por %p67, %p68
      %p70 = scmp.ne.s32.totalorder %s62, %s64
      %p71 = scmp.eq.s32.totalorder %s19, 3
      %p72 = por %p70, %p71
      %p73 = scmp.ne.s32.totalorder %s64, %s65
      %p74 = scmp.eq.s32.totalorder %s19, 0
      %p75 = por %p73, %p74
      %p76 = scmp.ne.s32.totalorder %s64, %s65
      %p77 = scmp.eq.s32.totalorder %s20, 3
      %p78 = por %p76, %p77
      %p80 = scmp.ne.s32.totalorder %s65, %s79
      %p81 = scmp.eq.s32.totalorder %s20, 0
      %p82 = por %p80, %p81
      %s84 = sadd.s32 %s83, 1
      %p87 = scmp.eq.s32.totalorder %s14, 3
      %p88 = scmp.ne.s32.totalorder %s83, %s85
      %p89 = scmp.eq.s32.totalorder %s14, 0
      %p90 = por %p88, %p89
      %p91 = scmp.ne.s32.totalorder %s83, %s85
      %p92 = scmp.eq.s32.totalorder %s19, 3
      %p93 = por %p91, %p92
      %p94 = scmp.ne.s32.totalorder %s85, %s86
      %p95 = scmp.eq.s32.totalorder %s19, 0
      %p96 = por %p94, %p95
      %p97 = scmp.ne.s32.totalorder %s85, %s86
      %p98 = scmp.eq.s32.totalorder %s20, 3
      %p99 = por %p97, %p98
      %p101 = scmp.ne.s32.totalorder %s86, %s100
      %p102 = scmp.eq.s32.totalorder %s20, 0
      %p103 = por %p101, %p102
      %s105 = sadd.s32 %s104, 1
      %p108 = scmp.eq.s32.totalorder %s14, 3
      %p109 = scmp.ne.s32.totalorder %s104, %s106
      %p110 = scmp.eq.s32.totalorder %s14, 0
      %p111 = por %p109, %p110
      %p112 = scmp.ne.s32.totalorder %s104, %s106
      %p113 = scmp.eq.s32.totalorder %s19, 3
      %p114 = por %p112, %p113
      %p115 = scmp.ne.s32.totalorder %s106, %s107
      %p116 = scmp.eq.s32.totalorder %s19, 0
      %p117 = por %p115, %p116
      %p118 = scmp.ne.s32.totalorder %s106, %s107
      %p119 = scmp.eq.s32.totalorder %s20, 3
      %p120 = por %p118, %p119
      %p122 = scmp.ne.s32.totalorder %s107, %s121
      %p123 = scmp.eq.s32.totalorder %s20, 0
      %p124 = por %p122, %p123
      %s126 = sadd.s32 %s125, 1
      %p129 = scmp.eq.s32.totalorder %s14, 3
      %p130 = scmp.ne.s32.totalorder %s125, %s127
      %p131 = scmp.eq.s32.totalorder %s14, 0
      %p132 = por %p130, %p131
      %p133 = scmp.ne.s32.totalorder %s125, %s127
      %p134 = scmp.eq.s32.totalorder %s19, 3
      %p135 = por %p133, %p134
      %p136 = scmp.ne.s32.totalorder %s127, %s128
      %p137 = scmp.eq.s32.totalorder %s19, 0
      %p138 = por %p136, %p137
      %p139 = scmp.ne.s32.totalorder %s127, %s128
      %p140 = scmp.eq.s32.totalorder %s20, 3
      %p141 = por %p139, %p140
      %p143 = scmp.ne.s32.totalorder %s128, %s142
      %p144 = scmp.eq.s32.totalorder %s20, 0
      %p145 = por %p143, %p144
      %s146 = ssub.s32 %s21, %s33
      %s147 = ssub.s32 %s22, %s29
      %s148 = sor.u32 %s146, %s147
      %p149 = scmp.eq.s32.totalorder %s148, 0
      %s151 = sadd.s32 %s150, 1
      %s152 = scalar_select %p149, %s150, %s151
      %p155 = pneg %p149
      %p156 = scmp.eq.s32.totalorder %s14, 3
      %p157 = por %p155, %p156
      %p158 = scmp.ne.s32.totalorder %s150, %s153
      %p159 = scmp.eq.s32.totalorder %s14, 0
      %p160 = por %p158, %p159
      %p161 = scmp.ne.s32.totalorder %s150, %s153
      %p162 = scmp.eq.s32.totalorder %s19, 3
      %p163 = por %p161, %p162
      %p164 = scmp.ne.s32.totalorder %s153, %s154
      %p165 = scmp.eq.s32.totalorder %s19, 0
      %p166 = por %p164, %p165
      %p167 = scmp.ne.s32.totalorder %s153, %s154
      %p168 = scmp.eq.s32.totalorder %s20, 3
      %p169 = por %p167, %p168
      %p171 = scmp.ne.s32.totalorder %s154, %s170
      %p172 = scmp.eq.s32.totalorder %s20, 0
      %p173 = por %p171, %p172
      %p174 = scmp.le.s32.totalorder 1, %s14
      %p175 = scmp.lt.s32.totalorder %s14, 5
      %p176 = pnand %p174, %p175
      %p177 = pneg %p176
      // Predicated region
      $region9: #{tpu_custom_call.1} parent=5 // pred_check
        _
      $region10: #{tpu_custom_call.1} parent=5 // pred_check_branch
        %179 = sbr.rel (%p176) target = $region12
      $region11: #{tpu_custom_call.1} parent=5 // pred_region
        %s180 = ssub.s32 %s14, 1
        // Predicated region
        $region13: #{tpu_custom_call.1} parent=11 // pred_check
          %p181 = pneg %p75
        $region14: #{tpu_custom_call.1} parent=11 // pred_check_branch
          %183 = sbr.rel (%p181) target = $region16
        $region15: #{tpu_custom_call.1} parent=11 // pred_region
          _
        $region16: #{tpu_custom_call.1} parent=11 // pred_fallthru
          _
        // Predicated region
        $region17: #{tpu_custom_call.1} parent=11 // pred_check
          %p184 = pneg %p96
        $region18: #{tpu_custom_call.1} parent=11 // pred_check_branch
          %186 = sbr.rel (%p184) target = $region20
        $region19: #{tpu_custom_call.1} parent=11 // pred_region
          _
        $region20: #{tpu_custom_call.1} parent=11 // pred_fallthru
          _
        // Predicated region
        $region21: #{tpu_custom_call.1} parent=11 // pred_check
          %p187 = pneg %p117
        $region22: #{tpu_custom_call.1} parent=11 // pred_check_branch
          %189 = sbr.rel (%p187) target = $region24
        $region23: #{tpu_custom_call.1} parent=11 // pred_region
          _
        $region24: #{tpu_custom_call.1} parent=11 // pred_fallthru
          _
        // Predicated region
        $region25: #{tpu_custom_call.1} parent=11 // pred_check
          %p190 = pneg %p138
        $region26: #{tpu_custom_call.1} parent=11 // pred_check_branch
          %192 = sbr.rel (%p190) target = $region28
        $region27: #{tpu_custom_call.1} parent=11 // pred_region
          _
        $region28: #{tpu_custom_call.1} parent=11 // pred_fallthru
          _
      $region12: #{tpu_custom_call.1} parent=5 // pred_fallthru
        _
      %p193 = scmp.lt.s32.totalorder %s14, 4
      // Predicated region
      $region29: #{tpu_custom_call.1} parent=5 // pred_check
        %p194 = pneg %p193
      $region30: #{tpu_custom_call.1} parent=5 // pred_check_branch
        %196 = sbr.rel (%p194) target = $region32
      $region31: #{tpu_custom_call.1} parent=5 // pred_region
        // Predicated region
        $region33: #{tpu_custom_call.1} parent=31 // pred_check
          %p197 = pneg %p48
        $region34: #{tpu_custom_call.1} parent=31 // pred_check_branch
          %199 = sbr.rel (%p197) target = $region36
        $region35: #{tpu_custom_call.1} parent=31 // pred_region
          %p200 = scmp.lt.s32.totalorder %s21, 1
          %s201 = scalar_select %p200, %s21, 1
          %p202 = scmp.lt.s32.totalorder %s22, 1
          %s203 = scalar_select %p202, %s22, 1
          %s204 = smul.addr %s203, 2
          %s205 = smul.addr %s201, 4
          %s206 = sadd.s32 %s204, %s205
          %s207 = smul.addr %s206, 2
          %s208 = scalar_lea.vmem %s0, %s207
        $region36: #{tpu_custom_call.1} parent=31 // pred_fallthru
          _
      $region32: #{tpu_custom_call.1} parent=5 // pred_fallthru
        _
      %p209 = scmp.le.s32.totalorder 1, %s14
      %p210 = scmp.lt.s32.totalorder %s14, 5
      %p211 = pnand %p209, %p210
      %p212 = pneg %p211
      // Predicated region
      $region37: #{tpu_custom_call.1} parent=5 // pred_check
        _
      $region38: #{tpu_custom_call.1} parent=5 // pred_check_branch
        %214 = sbr.rel (%p211) target = $region40
      $region39: #{tpu_custom_call.1} parent=5 // pred_region
        %s215 = ssub.s32 %s14, 1
        %p216 = scmp.lt.s32.totalorder %s23, 1
        %s217 = scalar_select %p216, %s23, 1
        %p218 = scmp.lt.s32.totalorder %s24, 1
        %s219 = scalar_select %p218, %s24, 1
        %s220 = smul.addr %s219, 2
        %s221 = smul.addr %s217, 4
        %s222 = sadd.s32 %s220, %s221
        %s223 = smul.addr %s222, 2
        %s224 = scalar_lea.vmem %s0, %s223
        %p225 = pneg %p54
        %p226 = pneg %p51
        %p227 = pneg %p75
        %p228 = pneg %p72
        %p229 = pneg %p96
        %p230 = pneg %p93
        %p231 = pneg %p117
        %p232 = pneg %p114
        %p233 = pneg %p138
        %p234 = pneg %p135
        %p235 = pneg %p166
        %p236 = pneg %p163
        %s237 = sand.u32 %s153, 1
        %s238 = scalar_lea.sflag [#allocation6], %s237
        %s239 = sand.u32 %s153, 1
        %s240 = smul.addr %s239, 8
        %s241 = scalar_lea.vmem [#allocation5], %s240
        %p242 = scmp.lt.s32.totalorder %s23, 1
        %s243 = scalar_select %p242, %s23, 1
        %p244 = scmp.lt.s32.totalorder %s24, 1
        %s245 = scalar_select %p244, %s24, 1
        %s246 = smul.addr %s245, 2
        %s247 = smul.addr %s243, 4
        %s248 = sadd.s32 %s246, %s247
        %s249 = smul.addr %s248, 2
        %s250 = scalar_lea.vmem %s0, %s249
        %v252 = vld [vmem:[%s250] sm:$0xf]
        %v255 = vunpack.c.l.s4 1983009808
        %v256 = vunpack.c.0.s8 %v255
        %v257 = vlaneseq
        %v258 = vshrl.u32 %v257, 7
        %v259 = vsub.s32 %v256, %v258
        %v260 = vrot.slane %v252, %v259
        %vm262 = vcmask 1041408
        %vm263 = vcmask 259076
        %vm264 = vmor %vm263, %vm262
        %265 = vst.msk [vmem:[#allocation3] sm:$0x33] %vm264, %v260
        %v266 = vcombine.low %v252, %v252
        %v268 = vunpack.c.l.s4 1983009808
        %v269 = vunpack.c.0.s8 %v268
        %v270 = vlaneseq
        %v271 = vshrl.u32 %v270, 7
        %v272 = vsub.s32 %v269, %v271
        %v273 = vrot.slane %v266, %v272
        %274 = vrot.lane.b32.xlu0 %v273, 127
        %v275 = vpop.permute.xlu0 %274
        %v276 = vrot.slane %v275, 4
        %vm277 = vcmask 1039360
        %v278 = vsel %vm277, %v275, %v276
        %vm280 = vcmask 1043458
        %vm281 = vcmask 261126
        %vm282 = vmor %vm281, %vm280
        %283 = vst.msk [vmem:[#allocation3] sm:$0xcc] %vm282, %v278
        %284 = vrot.lane.b32.xlu0 %v260, 126
        %v285 = vpop.permute.xlu0 %284
        %v286 = vrot.slane %v285, 4
        %vm287 = vcmask 1031168
        %v288 = vsel %vm287, %v285, %v286
        %290 = vst.msk [vmem:[#allocation3 + $0x8] sm:$0x33] %vm264, %v288
        %291 = vrot.lane.b32.xlu0 %v273, 112
        %v292 = vpop.permute.xlu0 %291
        %v293 = vrot.slane %v292, 4
        %vm294 = vcmask 916480
        %v295 = vsel %vm294, %v292, %v293
        %297 = vst.msk [vmem:[#allocation3 + $0x8] sm:$0xcc] %vm282, %v295
        %298 = vrot.lane.b32.xlu0 %v260, 111
        %v299 = vpop.permute.xlu0 %298
        %v300 = vrot.slane %v299, 4
        %vm301 = vcmask 908288
        %v302 = vsel %vm301, %v299, %v300
        %304 = vst.msk [vmem:[#allocation3 + $0x10] sm:$0x33] %vm264, %v302
        %305 = vrot.lane.b32.xlu0 %v273, 110
        %v306 = vpop.permute.xlu0 %305
        %v307 = vrot.slane %v306, 4
        %vm308 = vcmask 900096
        %v309 = vsel %vm308, %v306, %v307
        %311 = vst.msk [vmem:[#allocation3 + $0x10] sm:$0xcc] %vm282, %v309
        %312 = vrot.lane.b32.xlu0 %v260, 96
        %v313 = vpop.permute.xlu0 %312
        %v314 = vrot.slane %v313, 4
        %vm315 = vcmask 785408
        %v316 = vsel %vm315, %v313, %v314
        %318 = vst.msk [vmem:[#allocation3 + $0x18] sm:$0x33] %vm264, %v316
        %319 = vrot.lane.b32.xlu0 %v273, 95
        %v320 = vpop.permute.xlu0 %319
        %v321 = vrot.slane %v320, 4
        %vm322 = vcmask 777216
        %v323 = vsel %vm322, %v320, %v321
        %325 = vst.msk [vmem:[#allocation3 + $0x18] sm:$0xcc] %vm282, %v323
        %326 = vrot.lane.b32.xlu0 %v260, 94
        %v327 = vpop.permute.xlu0 %326
        %v328 = vrot.slane %v327, 4
        %vm329 = vcmask 769024
        %v330 = vsel %vm329, %v327, %v328
        %332 = vst.msk [vmem:[#allocation3 + $0x20] sm:$0x33] %vm264, %v330
        %v333 = vld [vmem:[%s1] sm:$0xf]
        %v334 = vld [vmem:[#allocation3] sm:$0xff]
        %v335 = vld [vmem:[#allocation3 + $0x8] sm:$0xff]
        %v336 = vld [vmem:[#allocation3 + $0x10] sm:$0xff]
        %v337 = vld [vmem:[#allocation3 + $0x18] sm:$0xff]
        %v338 = vld [vmem:[#allocation3 + $0x20] sm:$0x33]
        %v339 = vld [vmem:[%s2] sm:$0xff]
        %341 = vset.pattern.permute.xlu0 0
        %342 = vperm.xlu0 %341, %v339
        %v343 = vpop.permute.xlu0 %342
        %v350 = vunpack.c.l.b16 %v334
        %v351 = vunpack.c.h.b16 %v334
        %v352 = vunpack.c.l.b16 %v335
        %v353 = vunpack.c.h.b16 %v335
        %v354 = vunpack.c.l.b16 %v336
        %v355 = vunpack.c.h.b16 %v336
        %v356 = vunpack.c.l.b16 %v337
        %v357 = vunpack.c.h.b16 %v337
        %v358 = vunpack.c.l.b16 %v338
        %v359 = vunpack.c.h.b16 %v338
        %v360 = vpack.c.b16 %v352, %v350
        %v361 = vpack.c.b16 %v353, %v351
        %v362 = vpack.c.b16 %v356, %v354
        %v363 = vpack.c.b16 %v357, %v355
        %v364 = vpack.c.b16 %v358, %v358
        %v365 = vpack.c.b16 %v359, %v359
        %vm370 = vcmask 293888
        %v372 = vsel %vm370, %v333, 0
        %v375 = vsel %vm262, %v364, 0
        %v378 = vsel %vm262, %v365, 0
        %380 = vmatprep.subr.bf16.mxu0 %v361
        %381 = vmatpush1.bf16.msra.mxu0 %v360
        %382 = vmatprep.subr.bf16.mxu0 %v363
        %383 = vmatpush1.bf16.msra.mxu0 %v362
        %384 = vmatprep.subr.bf16.mxu0 %v378
        %385 = vmatpush1.bf16.msra.mxu0 %v375
        %386 = vmatprep.subr.bf16.mxu0 0
        %387 = vmatpush1.bf16.msra.mxu0 0
        %388 = vmatprep.subr.bf16.mxu0 0
        %389 = vmatpush1.bf16.msra.mxu0 0
        %390 = vmatprep.subr.bf16.mxu0 0
        %391 = vmatpush1.bf16.msra.mxu0 0
        %392 = vmatprep.subr.bf16.mxu0 0
        %393 = vmatpush1.bf16.msra.mxu0 0
        %394 = vmatprep.subr.bf16.mxu0 0
        %395 = vmatpush1.bf16.msra.mxu0 0
        %396 = vmatprep.subr.bf16.mxu0 0
        %397 = vmatpush1.bf16.msra.mxu0 0
        %398 = vmatprep.subr.bf16.mxu0 0
        %399 = vmatpush1.bf16.msra.mxu0 0
        %400 = vmatprep.subr.bf16.mxu0 0
        %401 = vmatpush1.bf16.msra.mxu0 0
        %402 = vmatprep.subr.bf16.mxu0 0
        %403 = vmatpush1.bf16.msra.mxu0 0
        %404 = vmatprep.subr.bf16.mxu0 0
        %405 = vmatpush1.bf16.msra.mxu0 0
        %406 = vmatprep.subr.bf16.mxu0 0
        %407 = vmatpush1.bf16.msra.mxu0 0
        %408 = vmatprep.subr.bf16.mxu0 0
        %409 = vmatpush1.bf16.msra.mxu0 0
        %410 = vmatprep.subr.bf16.mxu0 0
        %411 = vmatpush1.bf16.msra.mxu0 0
        %412 = vmatprep.mubr.bf16.mxu0 0
        %413 = vmatmul.mubr.bf16.gmra.mrb[0].mxu0 %v372
        %v414 = vpop.f32.mrb[0].mxu0
        %v415 = vadd.f32 %v343, %v414
        %v416 = vpop.f32.mrb[0].mxu0
        %v417 = vadd.f32 %v343, %v416
        %v418 = vpop.f32.mrb[0].mxu0
        %v419 = vpop.f32.mrb[0].mxu0
        %420 = vdwg.mxu0
        %v421 = vmax.f32 %v415, 0.0
        %v422 = vmax.f32 %v417, 0.0
        %v423 = vpack.c.bf16 %v421, %v421
        %v424 = vpack.c.bf16 %v422, %v422
        %v427 = vunpack.c.l.b16 %v423
        %v428 = vunpack.c.l.b16 %v424
        %v429 = vpack.c.b16 %v428, %v427
        %vm431 = vcmask 1043456
        %vm432 = vcmask 261124
        %vm433 = vmor %vm432, %vm431
        %434 = vst.msk [vmem:[#allocation2] sm:$0xff] %vm433, %v429
        %vm435 = vcmask 273664
        %436 = vst.msk [vmem:[#allocation2 + $0x4] sm:$0xf] %vm435, 0
        %v437 = vld [vmem:[#allocation2] sm:$0xf]
        %438 = vst [vmem:[#allocation4] sm:$0xf] %v437
        %v439 = vld [vmem:[#allocation2] sm:$0xff]
        %441 = vrot.lane.b32.xlu0 %v439, 127
        %v442 = vpop.permute.xlu0 %441
        %v443 = vrot.slane %v442, 4
        %v444 = vsel %vm277, %v442, %v443
        %446 = vst [vmem:[#allocation4 + $0x4] sm:$0xf] %v444
        %v447 = vld [vmem:[#allocation2] sm:$0xff]
        %449 = vrot.lane.b32.xlu0 %v447, 126
        %v450 = vpop.permute.xlu0 %449
        %v451 = vrot.slane %v450, 4
        %v452 = vsel %vm287, %v450, %v451
        %454 = vst [vmem:[#allocation4 + $0x8] sm:$0xf] %v452
        %v455 = vld [vmem:[#allocation2] sm:$0xff]
        %457 = vrot.lane.b32.xlu0 %v455, 112
        %v458 = vpop.permute.xlu0 %457
        %v459 = vrot.slane %v458, 4
        %v460 = vsel %vm294, %v458, %v459
        %462 = vst [vmem:[#allocation4 + $0xc] sm:$0xf] %v460
        %v463 = vld [vmem:[#allocation2] sm:$0xff]
        %465 = vrot.lane.b32.xlu0 %v463, 111
        %v466 = vpop.permute.xlu0 %465
        %v467 = vrot.slane %v466, 4
        %v468 = vsel %vm301, %v466, %v467
        %470 = vst [vmem:[#allocation4 + $0x10] sm:$0xf] %v468
        %v471 = vld [vmem:[#allocation2] sm:$0xff]
        %473 = vrot.lane.b32.xlu0 %v471, 110
        %v474 = vpop.permute.xlu0 %473
        %v475 = vrot.slane %v474, 4
        %v476 = vsel %vm308, %v474, %v475
        %478 = vst [vmem:[#allocation4 + $0x14] sm:$0xf] %v476
        %v479 = vld [vmem:[#allocation2] sm:$0xff]
        %481 = vrot.lane.b32.xlu0 %v479, 96
        %v482 = vpop.permute.xlu0 %481
        %v483 = vrot.slane %v482, 4
        %v484 = vsel %vm315, %v482, %v483
        %486 = vst [vmem:[#allocation4 + $0x18] sm:$0xf] %v484
        %v487 = vld [vmem:[#allocation2] sm:$0xff]
        %489 = vrot.lane.b32.xlu0 %v487, 95
        %v490 = vpop.permute.xlu0 %489
        %v491 = vrot.slane %v490, 4
        %v492 = vsel %vm322, %v490, %v491
        %494 = vst [vmem:[#allocation4 + $0x1c] sm:$0xf] %v492
        %v495 = vld [vmem:[#allocation2] sm:$0xff]
        %497 = vrot.lane.b32.xlu0 %v495, 94
        %v498 = vpop.permute.xlu0 %497
        %v499 = vrot.slane %v498, 4
        %v500 = vsel %vm329, %v498, %v499
        %502 = vst [vmem:[#allocation4 + $0x20] sm:$0xf] %v500
        %v503 = vld [vmem:[%s3] sm:$0xf]
        %v504 = vld [vmem:[#allocation4] sm:$0xf]
        %v505 = vld [vmem:[#allocation4 + $0x4] sm:$0xf]
        %v506 = vld [vmem:[#allocation4 + $0x8] sm:$0xf]
        %v507 = vld [vmem:[#allocation4 + $0xc] sm:$0xf]
        %v508 = vld [vmem:[#allocation4 + $0x10] sm:$0xf]
        %v509 = vld [vmem:[#allocation4 + $0x14] sm:$0xf]
        %v510 = vld [vmem:[#allocation4 + $0x18] sm:$0xf]
        %v511 = vld [vmem:[#allocation4 + $0x1c] sm:$0xf]
        %v512 = vld [vmem:[#allocation4 + $0x20] sm:$0xf]
        %v513 = vld [vmem:[%s4] sm:$0xff]
        %515 = vset.pattern.permute.xlu0 0
        %516 = vperm.xlu0 %515, %v513
        %v517 = vpop.permute.xlu0 %516
        %v528 = vunpack.c.l.b16 %v504
        %v529 = vunpack.c.l.b16 %v505
        %v530 = vunpack.c.l.b16 %v506
        %v531 = vunpack.c.l.b16 %v507
        %v532 = vunpack.c.l.b16 %v508
        %v533 = vunpack.c.l.b16 %v509
        %v534 = vunpack.c.l.b16 %v510
        %v535 = vunpack.c.l.b16 %v511
        %v536 = vunpack.c.l.b16 %v512
        %v537 = vpack.c.b16 %v529, %v528
        %v538 = vpack.c.b16 %v531, %v530
        %v539 = vpack.c.b16 %v533, %v532
        %v540 = vpack.c.b16 %v535, %v534
        %v541 = vpack.c.b16 %v536, %v536
        %vm546 = vcmask 588800
        %v548 = vsel %vm546, %v503, 0
        %v551 = vsel %vm431, %v541, 0
        %553 = vmatprep.subr.bf16.mxu0 0
        %554 = vmatpush1.bf16.msra.mxu0 %v537
        %555 = vmatprep.subr.bf16.mxu0 0
        %556 = vmatpush1.bf16.msra.mxu0 %v538
        %557 = vmatprep.subr.bf16.mxu0 0
        %558 = vmatpush1.bf16.msra.mxu0 %v539
        %559 = vmatprep.subr.bf16.mxu0 0
        %560 = vmatpush1.bf16.msra.mxu0 %v540
        %561 = vmatprep.subr.bf16.mxu0 0
        %562 = vmatpush1.bf16.msra.mxu0 %v551
        %563 = vmatprep.subr.bf16.mxu0 0
        %564 = vmatpush1.bf16.msra.mxu0 0
        %565 = vmatprep.subr.bf16.mxu0 0
        %566 = vmatpush1.bf16.msra.mxu0 0
        %567 = vmatprep.subr.bf16.mxu0 0
        %568 = vmatpush1.bf16.msra.mxu0 0
        %569 = vmatprep.subr.bf16.mxu0 0
        %570 = vmatpush1.bf16.msra.mxu0 0
        %571 = vmatprep.subr.bf16.mxu0 0
        %572 = vmatpush1.bf16.msra.mxu0 0
        %573 = vmatprep.subr.bf16.mxu0 0
        %574 = vmatpush1.bf16.msra.mxu0 0
        %575 = vmatprep.subr.bf16.mxu0 0
        %576 = vmatpush1.bf16.msra.mxu0 0
        %577 = vmatprep.subr.bf16.mxu0 0
        %578 = vmatpush1.bf16.msra.mxu0 0
        %579 = vmatprep.subr.bf16.mxu0 0
        %580 = vmatpush1.bf16.msra.mxu0 0
        %581 = vmatprep.subr.bf16.mxu0 0
        %582 = vmatpush1.bf16.msra.mxu0 0
        %583 = vmatprep.subr.bf16.mxu0 0
        %584 = vmatpush1.bf16.msra.mxu0 0
        %585 = vmatprep.mubr.bf16.mxu0 0
        %586 = vmatmul.mubr.bf16.gmra.mrb[0].mxu0 %v548
        %v587 = vpop.f32.mrb[0].mxu0
        %v588 = vadd.f32 %v517, %v587
        %v589 = vpop.f32.mrb[0].mxu0
        %v590 = vpop.f32.mrb[0].mxu0
        %v591 = vpop.f32.mrb[0].mxu0
        %592 = vdwg.mxu0
        %v593 = vmax.f32 %v588, 0.0
        %594 = vst [vmem:[%s241] sm:$0xff] %v593
        %s595 = sand.u32 %s153, 1
        %s596 = scalar_lea.sflag [#allocation6], %s595
        %s597 = sand.u32 %s153, 1
        %s598 = smul.addr %s597, 8
        %s599 = scalar_lea.vmem [#allocation5], %s598
        // Predicated region
        $region41: #{tpu_custom_call.1} parent=39 // pred_check
          %p600 = pneg %p163
        $region42: #{tpu_custom_call.1} parent=39 // pred_check_branch
          %602 = sbr.rel (%p600) target = $region44
        $region43: #{tpu_custom_call.1} parent=39 // pred_region
          %s604 = ssub.s32 128, 128
          %605 = vsyncadd %s596, %s604
          %s606 = smul.addr %s23, 2
          %s607 = sadd.s32 %s24, %s606
          %s608 = smul.addr %s607, 128
          %s609 = scalar_lea.hbm %s5, %s608
          %s611 = sshll.u32 %s599, 4
          %s612 = int_to_ptr.vmem [resolvable:$true] %s611
          %614 = dma.vmem_to_hbm [thread:$0]  %s612, 128, %s609, %s596
        $region44: #{tpu_custom_call.1} parent=39 // pred_fallthru
          _
      $region40: #{tpu_custom_call.1} parent=5 // pred_fallthru
        _
      %p615 = scmp.le.s32.totalorder 2, %s14
      // Predicated region
      $region45: #{tpu_custom_call.1} parent=5 // pred_check
        %p616 = pneg %p615
      $region46: #{tpu_custom_call.1} parent=5 // pred_check_branch
        %618 = sbr.rel (%p616) target = $region48
      $region47: #{tpu_custom_call.1} parent=5 // pred_region
        %s619 = ssub.s32 %s14, 2
        // Predicated region
        $region49: #{tpu_custom_call.1} parent=47 // pred_check
          %p620 = pneg %p169
        $region50: #{tpu_custom_call.1} parent=47 // pred_check_branch
          %622 = sbr.rel (%p620) target = $region52
        $region51: #{tpu_custom_call.1} parent=47 // pred_region
          %s623 = sand.u32 %s154, 1
          %s624 = scalar_lea.sflag [#allocation6], %s623
          %s625 = sand.u32 %s154, 1
          %s626 = smul.addr %s625, 8
          %s627 = scalar_lea.vmem [#allocation5], %s626
          %628 = dma.done %s624, 128
        $region52: #{tpu_custom_call.1} parent=47 // pred_fallthru
          _
      $region48: #{tpu_custom_call.1} parent=5 // pred_fallthru
        _
    $region6: #{tpu_custom_call.1} parent=1 // loop_footer
      %s18 = sadd.s32 1, %s14
    $region7: #{tpu_custom_call.1} parent=1 // loop_footer_branch
      %13 = sbr.rel target = $region3
    $region8: #{tpu_custom_call.1} parent=1 // loop_exit
      _
    %629 = vsyncpa [#allocation6], 1
    %s630 = scalar_lea.sflag [#allocation6], 1
    %631 = vsyncpa %s630, 1

</llo_original>
